<compile_context>
chip_gen: v6e
topology: v6e:2x2x1
jax: 0.10.0
libtpu: 0.0.40
codegen_flags: <defaults>
</compile_context>

<pallas_src>
import jax
import jax.numpy as jnp
from jax.experimental import pallas as pl
from jax.experimental.pallas import tpu as pltpu


def ppi2cell_kernel(ppit_ref, w_ref, b_ref, emb_ref, out_ref):
    # ppit_ref : (D, tn)  bf16   block of ppi_emb^T (pre-transposed, padded)
    # w_ref    : (H, D)   bf16   full Linear weight
    # b_ref    : (H, 1)   f32    full Linear bias (column vector)
    # emb_ref  : (B, H)   f32    gathered + renormed cell embeddings
    # out_ref  : (B, tn)  f32    output block

    # projT block (H, tn): standard (last, first) contraction -> no Mosaic transpose.
    projt = jnp.dot(w_ref[...], ppit_ref[...], preferred_element_type=jnp.float32)
    projt = projt + b_ref[...]                              # broadcast (H,1) over lanes
    projt = jnp.where(projt >= 0.0, projt, 0.01 * projt)    # LeakyReLU(0.01), lane-dense

    # y block (B, tn) = emb (B, H) @ projT (H, tn), again a standard contraction.
    out_ref[...] = jnp.dot(emb_ref[...], projt, preferred_element_type=jnp.float32)


def ppi2cell_forward(x, cell_table, ppi_emb, W, b, *, tn=512):
    """x: (B, 1) int32 cell indices. Returns (B, N_prot) float32."""
    # --- grid-invariant work hoisted out of the kernel ---------------------
    idx = x[:, 0]                                   # x.squeeze(dim=1)
    emb = cell_table[idx].astype(jnp.float32)       # (B, H) gather
    # nn.Embedding(max_norm=1.0, norm_type=2.0): renorm rows with L2 norm > 1.
    norm = jnp.sqrt(jnp.sum(emb * emb, axis=-1, keepdims=True))
    emb = emb * jnp.where(norm > 1.0, 1.0 / (norm + 1e-7), 1.0)

    N, D = ppi_emb.shape
    H = W.shape[0]
    B = emb.shape[0]

    # --- tile-size selection: lane-aligned, large, but keep >= 2 grid steps ----
    n128 = pl.cdiv(N, 128)                          # number of 128-lane tiles in N
    t128 = max(1, min(int(tn) // 128, n128))        # tiles per block
    while t128 > 1 and pl.cdiv(n128, t128) < 2:     # leave work for both v7x TCs
        t128 -= 1
    tn_eff = t128 * 128
    grid_n = pl.cdiv(N, tn_eff)
    N_pad = grid_n * tn_eff

    # --- layout plumbing (one-time, in XLA): transpose, pad, bf16 cast -----
    ppit = jnp.transpose(ppi_emb).astype(jnp.bfloat16)      # (D, N)
    if N_pad != N:
        ppit = jnp.pad(ppit, ((0, 0), (0, N_pad - N)))      # zero cols, sliced off later
    w_bf16 = W.astype(jnp.bfloat16)                         # (H, D)
    b_col = b.reshape(H, 1).astype(jnp.float32)             # (H, 1)

    out = pl.pallas_call(
        ppi2cell_kernel,
        out_shape=jax.ShapeDtypeStruct((B, N_pad), jnp.float32),
        grid_spec=pltpu.PrefetchScalarGridSpec(
            num_scalar_prefetch=0,
            grid=(grid_n,),
            in_specs=[
                pl.BlockSpec((D, tn_eff), lambda i: (0, i)),  # ppi_emb^T tile
                pl.BlockSpec((H, D), lambda i: (0, 0)),       # W (full, resident)
                pl.BlockSpec((H, 1), lambda i: (0, 0)),       # bias (full)
                pl.BlockSpec((B, H), lambda i: (0, 0)),       # renormed cell emb (full)
            ],
            out_specs=pl.BlockSpec((B, tn_eff), lambda i: (0, i)),
        ),
        compiler_params=pltpu.CompilerParams(
            dimension_semantics=("parallel",),
        ),
    )(ppit, w_bf16, b_col, emb)

    return out[:, :N]


def reference_forward(x, cell_table, ppi_emb, W, b):
    idx = x[:, 0]
    emb = cell_table[idx]
    norm = jnp.linalg.norm(emb, axis=-1, keepdims=True)
    emb = emb * jnp.where(norm > 1.0, 1.0 / (norm + 1e-7), 1.0)
    proj = ppi_emb @ W.T + b[None, :]
    proj = jnp.where(proj >= 0.0, proj, 0.01 * proj)
    return emb @ proj.T


if __name__ == "__main__":
    # Small, module-consistent shapes; n_prot deliberately not a multiple of 128
    # to exercise the padding + output-slice path, with a 2-step grid.
    n_cell = 16       # number of cell lines
    n_prot = 300      # rows of ppi_emb (padded to 512 internally, tile = 256)
    d_ppi = 128       # ppi_emb feature dim
    hidden = 32       # hidden_dim
    batch = 8

    key = jax.random.PRNGKey(0)
    k1, k2, k3, k4, k5 = jax.random.split(key, 5)

    ppi_emb = jax.random.normal(k1, (n_prot, d_ppi), dtype=jnp.float32)
    # Linear(d_ppi -> hidden) params (PyTorch layout: y = x @ W^T + b)
    W = jax.random.normal(k2, (hidden, d_ppi), dtype=jnp.float32) * (1.0 / jnp.sqrt(d_ppi))
    b = jax.random.normal(k3, (hidden,), dtype=jnp.float32) * 0.01
    # Embedding(n_cell, hidden) table (rows with norm > 1 exercise the renorm)
    cell_table = jax.random.normal(k4, (n_cell, hidden), dtype=jnp.float32)
    # Input: (B, 1) integer cell indices
    x = jax.random.randint(k5, (batch, 1), 0, n_cell, dtype=jnp.int32)

    y = ppi2cell_forward(x, cell_table, ppi_emb, W, b)
    y = jax.block_until_ready(y)

    y_ref = reference_forward(x, cell_table, ppi_emb, W, b)
    assert y.shape == (batch, n_prot)
    # Tolerance relaxed vs pure f32 because ppi_emb / W are streamed as bf16
    # (accumulation stays f32).
    assert jnp.allclose(y, y_ref, rtol=5e-2, atol=5e-2), "mismatch vs reference"

    print("KERNEL_OK")
</pallas_src>

<mosaic_0001>
module attributes {stable_mosaic.version = 11 : i64} {
  func.func @ppi2cell_kernel(%arg0: i32, %arg1: memref<128x256xbf16, #tpu.memory_space<vmem>>, %arg2: memref<32x128xbf16, #tpu.memory_space<vmem>>, %arg3: memref<32x1xf32, #tpu.memory_space<vmem>>, %arg4: memref<8x32xf32, #tpu.memory_space<vmem>>, %arg5: memref<8x256xf32, #tpu.memory_space<vmem>>) attributes {dimension_semantics = [#tpu.dimension_semantics<parallel>], iteration_bounds = array<i64: 2>, scalar_prefetch = 0 : i64, scratch_operands = 0 : i64, tpu.core_type = #tpu.core_type<tc>, window_params = [{transform_indices = @transform_0, window_bounds = array<i64: 128, 256>}, {pipeline_mode = #tpu.pipeline_mode<synchronous>, transform_indices = @transform_1, window_bounds = array<i64: 32, 128>}, {pipeline_mode = #tpu.pipeline_mode<synchronous>, transform_indices = @transform_2, window_bounds = array<i64: 32, 1>}, {pipeline_mode = #tpu.pipeline_mode<synchronous>, transform_indices = @transform_3, window_bounds = array<i64: 8, 32>}, {transform_indices = @transform_4, window_bounds = array<i64: 8, 256>}]} {
    %c0 = arith.constant 0 : index
    %c0_0 = arith.constant 0 : index
    %0 = vector.load %arg2[%c0, %c0_0] : memref<32x128xbf16, #tpu.memory_space<vmem>>, vector<32x128xbf16>
    %c0_1 = arith.constant 0 : index
    %c0_2 = arith.constant 0 : index
    %1 = vector.load %arg1[%c0_1, %c0_2] : memref<128x256xbf16, #tpu.memory_space<vmem>>, vector<128x256xbf16>
    %cst = arith.constant dense<0.000000e+00> : vector<32x256xf32>
    %2 = tpu.matmul %0, %1, %cst {dimension_numbers = #tpu.dot_dimension_numbers<[1], [0], [0], [1], [0, 0, 1, 1], [], []>} : vector<32x128xbf16>, vector<128x256xbf16>, vector<32x256xf32> -> vector<32x256xf32>
    %c0_3 = arith.constant 0 : index
    %c0_4 = arith.constant 0 : index
    %3 = vector.load %arg3[%c0_3, %c0_4] : memref<32x1xf32, #tpu.memory_space<vmem>>, vector<32x1xf32>
    %4 = vector.broadcast %3 : vector<32x1xf32> to vector<32x256xf32>
    %5 = arith.addf %2, %4 : vector<32x256xf32>
    %cst_5 = arith.constant 0.000000e+00 : f32
    %6 = vector.broadcast %cst_5 : f32 to vector<32x256xf32>
    %7 = arith.cmpf oge, %5, %6 : vector<32x256xf32>
    %cst_6 = arith.constant 0.00999999977 : f32
    %8 = vector.broadcast %cst_6 : f32 to vector<32x256xf32>
    %9 = arith.mulf %8, %5 : vector<32x256xf32>
    %10 = arith.select %7, %5, %9 : vector<32x256xi1>, vector<32x256xf32>
    %c0_7 = arith.constant 0 : index
    %c0_8 = arith.constant 0 : index
    %11 = vector.load %arg4[%c0_7, %c0_8] : memref<8x32xf32, #tpu.memory_space<vmem>>, vector<8x32xf32>
    %cst_9 = arith.constant dense<0.000000e+00> : vector<8x256xf32>
    %12 = tpu.matmul %11, %10, %cst_9 {dimension_numbers = #tpu.dot_dimension_numbers<[1], [0], [0], [1], [0, 0, 1, 1], [], []>} : vector<8x32xf32>, vector<32x256xf32>, vector<8x256xf32> -> vector<8x256xf32>
    %c0_10 = arith.constant 0 : index
    %c0_11 = arith.constant 0 : index
    %13 = vector.load %arg5[%c0_10, %c0_11] : memref<8x256xf32, #tpu.memory_space<vmem>>, vector<8x256xf32>
    tpu.vector_store %arg5[%c0_10, %c0_11], %12 {strides = array<i32>} : memref<8x256xf32, #tpu.memory_space<vmem>>, vector<8x256xf32>,
    return
  }
  func.func @transform_0(%arg0: i32) -> (i32, i32) {
    %c0_i32 = arith.constant 0 : i32
    %c0_i32_0 = arith.constant 0 : i32
    return %c0_i32, %arg0 : i32, i32
  }
  func.func @transform_1(%arg0: i32) -> (i32, i32) {
    %c0_i32 = arith.constant 0 : i32
    %c0_i32_0 = arith.constant 0 : i32
    %c0_i32_1 = arith.constant 0 : i32
    return %c0_i32, %c0_i32_0 : i32, i32
  }
  func.func @transform_2(%arg0: i32) -> (i32, i32) {
    %c0_i32 = arith.constant 0 : i32
    %c0_i32_0 = arith.constant 0 : i32
    %c0_i32_1 = arith.constant 0 : i32
    return %c0_i32, %c0_i32_0 : i32, i32
  }
  func.func @transform_3(%arg0: i32) -> (i32, i32) {
    %c0_i32 = arith.constant 0 : i32
    %c0_i32_0 = arith.constant 0 : i32
    %c0_i32_1 = arith.constant 0 : i32
    return %c0_i32, %c0_i32_0 : i32, i32
  }
  func.func @transform_4(%arg0: i32) -> (i32, i32) {
    %c0_i32 = arith.constant 0 : i32
    %c0_i32_0 = arith.constant 0 : i32
    return %c0_i32, %arg0 : i32, i32
  }
}

</mosaic_0001>

<llo_original>
// kernel: tpu_custom_call.1
$region0: #{tpu_custom_call.1}
  #allocation0 [shape = 'u32[]', space=smem, size = 0x4, offset = 0x4, fixed_abs, tag = 'smem constant byte address 0x4 - core index']
  #allocation1 [shape = 'u32[144,128]{1,0:T(1,128)}', space=vmem, size = 0x12000, scoped, tag = 'internal scratch']
  %s0 = inlined_call_operand.hbm [shape: bf16[128,512], index: 0, kind: input, shape index: {}]
  %s1 = inlined_call_operand.vmem [shape: bf16[32,128], index: 1, kind: input, shape index: {}]
  %s2 = inlined_call_operand.vmem [shape: f32[32,1], index: 2, kind: input, shape index: {}]
  %s3 = inlined_call_operand.vmem [shape: f32[8,32], index: 3, kind: input, shape index: {}]
  %s4 = inlined_call_operand.hbm [shape: f32[8,512], index: 4, kind: output, shape index: {}]
  %s5 = sld [smem:[#allocation0]]
  $region53: #{tpu_custom_call.1} parent=0
    _
  %s7 = ssub.s32 1, %s5
  %s8 = scalar_select 0, %s7, %s5
  $region1: #{tpu_custom_call.1} parent=0
    #allocation2 [shape = 'u8[131072]{0}', space=vmem, size = 0x20000, scoped, tag = 'input window, operand 0']
    #allocation3 [shape = 's32[2]{0}', space=sflag, size = 0x8, scoped, tag = 'scoped memory for tpu_custom_call.1']
    #allocation4 [shape = 's32[2]{0}', space=sflag, size = 0x8, scoped, tag = 'scoped memory for tpu_custom_call.1']
    #allocation5 [shape = 'u8[16384]{0}', space=vmem, size = 0x4000, scoped, tag = 'output window, operand 0']
    %9 = vsyncpa [#allocation3], 0
    %s10 = scalar_lea.sflag [#allocation3], 1
    %11 = vsyncpa %s10, 0
    %12 = vsyncpa [#allocation4], 0
    %s13 = scalar_lea.sflag [#allocation4], 1
    %14 = vsyncpa %s13, 0
    loop: start=0, step=1, limit=4
    $region2: #{tpu_custom_call.1} parent=1 // loop_pre_header
      _
    $region3: #{tpu_custom_call.1} parent=1 // loop_header
      %s16 = sphi 0, %s20
      %p17 = scmp.ge.s32.totalorder %s16, 4
      %s26 = sphi 0, %s28
      %s29 = sphi 0, %s26
      %s30 = sphi 0, %s29
      %s46 = sphi 0, %s30
      %s50 = sphi 0, %s50
      %s52 = sphi 0, %s50
      %s53 = sphi 0, %s52
      %s67 = sphi 0, %s53
      %s71 = sphi 0, %s71
      %s73 = sphi 0, %s71
      %s74 = sphi 0, %s73
      %s88 = sphi 0, %s74
      %s92 = sphi 0, %s92
      %s94 = sphi 0, %s92
      %s95 = sphi 0, %s94
      %s109 = sphi 0, %s95
      %s115 = sphi 0, %s117
      %s118 = sphi 0, %s115
      %s119 = sphi 0, %s118
      %s135 = sphi 0, %s119
    $region4: #{tpu_custom_call.1} parent=1 // loop_header_branch
      %19 = sbr.rel (%p17) target = $region8
    $region5: #{tpu_custom_call.1} parent=1 // loop_body
      %s21 = ssub.s32 %s16, 1
      %s22 = ssub.s32 %s16, 2
      %s23 = sadd.s32 %s16, 1
      %s24 = ssub.s32 %s16, %s23
      %p25 = scmp.eq.s32.totalorder %s24, 0
      %s27 = sadd.s32 %s26, 1
      %s28 = scalar_select %p25, %s26, %s27
      %p31 = pneg %p25
      %p32 = scmp.eq.s32.totalorder %s16, 1
      %p33 = por %p31, %p32
      %p34 = scmp.ne.s32.totalorder %s26, %s29
      %p35 = scmp.eq.s32.totalorder %s16, 0
      %p36 = por %p34, %p35
      %p37 = scmp.ne.s32.totalorder %s26, %s29
      %p38 = scmp.eq.s32.totalorder %s21, 1
      %p39 = por %p37, %p38
      %p40 = scmp.ne.s32.totalorder %s29, %s30
      %p41 = scmp.eq.s32.totalorder %s21, 0
      %p42 = por %p40, %p41
      %p43 = scmp.ne.s32.totalorder %s29, %s30
      %p44 = scmp.eq.s32.totalorder %s22, 1
      %p45 = por %p43, %p44
      %p47 = scmp.ne.s32.totalorder %s30, %s46
      %p48 = scmp.eq.s32.totalorder %s22, 0
      %p49 = por %p47, %p48
      %s51 = sadd.s32 %s50, 1
      %p54 = scmp.eq.s32.totalorder %s16, 1
      %p55 = scmp.ne.s32.totalorder %s50, %s52
      %p56 = scmp.eq.s32.totalorder %s16, 0
      %p57 = por %p55, %p56
      %p58 = scmp.ne.s32.totalorder %s50, %s52
      %p59 = scmp.eq.s32.totalorder %s21, 1
      %p60 = por %p58, %p59
      %p61 = scmp.ne.s32.totalorder %s52, %s53
      %p62 = scmp.eq.s32.totalorder %s21, 0
      %p63 = por %p61, %p62
      %p64 = scmp.ne.s32.totalorder %s52, %s53
      %p65 = scmp.eq.s32.totalorder %s22, 1
      %p66 = por %p64, %p65
      %p68 = scmp.ne.s32.totalorder %s53, %s67
      %p69 = scmp.eq.s32.totalorder %s22, 0
      %p70 = por %p68, %p69
      %s72 = sadd.s32 %s71, 1
      %p75 = scmp.eq.s32.totalorder %s16, 1
      %p76 = scmp.ne.s32.totalorder %s71, %s73
      %p77 = scmp.eq.s32.totalorder %s16, 0
      %p78 = por %p76, %p77
      %p79 = scmp.ne.s32.totalorder %s71, %s73
      %p80 = scmp.eq.s32.totalorder %s21, 1
      %p81 = por %p79, %p80
      %p82 = scmp.ne.s32.totalorder %s73, %s74
      %p83 = scmp.eq.s32.totalorder %s21, 0
      %p84 = por %p82, %p83
      %p85 = scmp.ne.s32.totalorder %s73, %s74
      %p86 = scmp.eq.s32.totalorder %s22, 1
      %p87 = por %p85, %p86
      %p89 = scmp.ne.s32.totalorder %s74, %s88
      %p90 = scmp.eq.s32.totalorder %s22, 0
      %p91 = por %p89, %p90
      %s93 = sadd.s32 %s92, 1
      %p96 = scmp.eq.s32.totalorder %s16, 1
      %p97 = scmp.ne.s32.totalorder %s92, %s94
      %p98 = scmp.eq.s32.totalorder %s16, 0
      %p99 = por %p97, %p98
      %p100 = scmp.ne.s32.totalorder %s92, %s94
      %p101 = scmp.eq.s32.totalorder %s21, 1
      %p102 = por %p100, %p101
      %p103 = scmp.ne.s32.totalorder %s94, %s95
      %p104 = scmp.eq.s32.totalorder %s21, 0
      %p105 = por %p103, %p104
      %p106 = scmp.ne.s32.totalorder %s94, %s95
      %p107 = scmp.eq.s32.totalorder %s22, 1
      %p108 = por %p106, %p107
      %p110 = scmp.ne.s32.totalorder %s95, %s109
      %p111 = scmp.eq.s32.totalorder %s22, 0
      %p112 = por %p110, %p111
      %s113 = ssub.s32 %s16, %s23
      %p114 = scmp.eq.s32.totalorder %s113, 0
      %s116 = sadd.s32 %s115, 1
      %s117 = scalar_select %p114, %s115, %s116
      %p120 = pneg %p114
      %p121 = scmp.eq.s32.totalorder %s16, 1
      %p122 = por %p120, %p121
      %p123 = scmp.ne.s32.totalorder %s115, %s118
      %p124 = scmp.eq.s32.totalorder %s16, 0
      %p125 = por %p123, %p124
      %p126 = scmp.ne.s32.totalorder %s115, %s118
      %p127 = scmp.eq.s32.totalorder %s21, 1
      %p128 = por %p126, %p127
      %p129 = scmp.ne.s32.totalorder %s118, %s119
      %p130 = scmp.eq.s32.totalorder %s21, 0
      %p131 = por %p129, %p130
      %p132 = scmp.ne.s32.totalorder %s118, %s119
      %p133 = scmp.eq.s32.totalorder %s22, 1
      %p134 = por %p132, %p133
      %p136 = scmp.ne.s32.totalorder %s119, %s135
      %p137 = scmp.eq.s32.totalorder %s22, 0
      %p138 = por %p136, %p137
      %p139 = scmp.le.s32.totalorder 1, %s16
      %p140 = scmp.lt.s32.totalorder %s16, 3
      %p141 = pnand %p139, %p140
      %p142 = pneg %p141
      // Predicated region
      $region9: #{tpu_custom_call.1} parent=5 // pred_check
        _
      $region10: #{tpu_custom_call.1} parent=5 // pred_check_branch
        %144 = sbr.rel (%p141) target = $region12
      $region11: #{tpu_custom_call.1} parent=5 // pred_region
        %s145 = ssub.s32 %s16, 1
        // Predicated region
        $region13: #{tpu_custom_call.1} parent=11 // pred_check
          %p146 = pneg %p63
        $region14: #{tpu_custom_call.1} parent=11 // pred_check_branch
          %148 = sbr.rel (%p146) target = $region16
        $region15: #{tpu_custom_call.1} parent=11 // pred_region
          _
        $region16: #{tpu_custom_call.1} parent=11 // pred_fallthru
          _
        // Predicated region
        $region17: #{tpu_custom_call.1} parent=11 // pred_check
          %p149 = pneg %p84
        $region18: #{tpu_custom_call.1} parent=11 // pred_check_branch
          %151 = sbr.rel (%p149) target = $region20
        $region19: #{tpu_custom_call.1} parent=11 // pred_region
          _
        $region20: #{tpu_custom_call.1} parent=11 // pred_fallthru
          _
        // Predicated region
        $region21: #{tpu_custom_call.1} parent=11 // pred_check
          %p152 = pneg %p105
        $region22: #{tpu_custom_call.1} parent=11 // pred_check_branch
          %154 = sbr.rel (%p152) target = $region24
        $region23: #{tpu_custom_call.1} parent=11 // pred_region
          _
        $region24: #{tpu_custom_call.1} parent=11 // pred_fallthru
          _
      $region12: #{tpu_custom_call.1} parent=5 // pred_fallthru
        _
      %p155 = scmp.lt.s32.totalorder %s16, 2
      // Predicated region
      $region25: #{tpu_custom_call.1} parent=5 // pred_check
        %p156 = pneg %p155
      $region26: #{tpu_custom_call.1} parent=5 // pred_check_branch
        %158 = sbr.rel (%p156) target = $region28
      $region27: #{tpu_custom_call.1} parent=5 // pred_region
        // Predicated region
        $region29: #{tpu_custom_call.1} parent=27 // pred_check
          %p159 = pneg %p36
        $region30: #{tpu_custom_call.1} parent=27 // pred_check_branch
          %161 = sbr.rel (%p159) target = $region32
        $region31: #{tpu_custom_call.1} parent=27 // pred_region
          %s162 = sand.u32 %s26, 1
          %s163 = scalar_lea.sflag [#allocation3], %s162
          %s164 = sand.u32 %s26, 1
          %s165 = smul.addr %s164, 128
          %s166 = scalar_lea.vmem [#allocation2], %s165
          %s167 = smul.u32 2, %s16
          %s169 = ssub.s32 2048, 2048
          %170 = vsyncadd %s163, %s169
          %s171 = smul.addr %s167, 64
          %s172 = scalar_lea.hbm %s0, %s171
          %s173 = sshll.u32 %s166, 4
          %s174 = int_to_ptr.vmem [resolvable:$true] %s173
          %179 = dma.hbm_to_vmem [thread:$0]  %s172, 2048, %s174, %s163, 256, 128, 8
        $region32: #{tpu_custom_call.1} parent=27 // pred_fallthru
          _
      $region28: #{tpu_custom_call.1} parent=5 // pred_fallthru
        _
      %p180 = scmp.le.s32.totalorder 1, %s16
      %p181 = scmp.lt.s32.totalorder %s16, 3
      %p182 = pnand %p180, %p181
      %p183 = pneg %p182
      // Predicated region
      $region33: #{tpu_custom_call.1} parent=5 // pred_check
        _
      $region34: #{tpu_custom_call.1} parent=5 // pred_check_branch
        %185 = sbr.rel (%p182) target = $region36
      $region35: #{tpu_custom_call.1} parent=5 // pred_region
        %s186 = ssub.s32 %s16, 1
        %s187 = sand.u32 %s29, 1
        %s188 = scalar_lea.sflag [#allocation3], %s187
        %s189 = sand.u32 %s29, 1
        %s190 = smul.addr %s189, 128
        %s191 = scalar_lea.vmem [#allocation2], %s190
        // Predicated region
        $region37: #{tpu_custom_call.1} parent=35 // pred_check
          %p192 = pneg %p42
        $region38: #{tpu_custom_call.1} parent=35 // pred_check_branch
          %194 = sbr.rel (%p192) target = $region40
        $region39: #{tpu_custom_call.1} parent=35 // pred_region
          %195 = dma.done %s188, 2048
        $region40: #{tpu_custom_call.1} parent=35 // pred_fallthru
          _
        %s196 = sand.u32 %s29, 1
        %s197 = scalar_lea.sflag [#allocation3], %s196
        %s198 = sand.u32 %s29, 1
        %s199 = smul.addr %s198, 128
        %s200 = scalar_lea.vmem [#allocation2], %s199
        %p201 = pneg %p42
        %p202 = pneg %p39
        %p203 = pneg %p63
        %p204 = pneg %p60
        %p205 = pneg %p84
        %p206 = pneg %p81
        %p207 = pneg %p105
        %p208 = pneg %p102
        %p209 = pneg %p131
        %p210 = pneg %p128
        %s211 = sand.u32 %s118, 1
        %s212 = scalar_lea.sflag [#allocation4], %s211
        %s213 = sand.u32 %s118, 1
        %s214 = smul.addr %s213, 16
        %s215 = scalar_lea.vmem [#allocation5], %s214
        %s216 = smul.u32 2, %s21
        %s217 = smul.u32 2, %s21
        %v219 = vld [vmem:[%s1] sm:$0xf]
        %v220 = vld [vmem:[%s1 + $0x4] sm:$0xf]
        %v221 = vld [vmem:[%s1 + $0x8] sm:$0xf]
        %v222 = vld [vmem:[%s1 + $0xc] sm:$0xf]
        %v223 = vld [vmem:[%s191] sm:$0xff]
        %v224 = vld [vmem:[%s191 + $0x8] sm:$0xff]
        %v225 = vld [vmem:[%s191 + $0x10] sm:$0xff]
        %v226 = vld [vmem:[%s191 + $0x18] sm:$0xff]
        %v227 = vld [vmem:[%s191 + $0x20] sm:$0xff]
        %v228 = vld [vmem:[%s191 + $0x28] sm:$0xff]
        %v229 = vld [vmem:[%s191 + $0x30] sm:$0xff]
        %v230 = vld [vmem:[%s191 + $0x38] sm:$0xff]
        %v231 = vld [vmem:[%s191 + $0x40] sm:$0xff]
        %v232 = vld [vmem:[%s191 + $0x48] sm:$0xff]
        %v233 = vld [vmem:[%s191 + $0x50] sm:$0xff]
        %v234 = vld [vmem:[%s191 + $0x58] sm:$0xff]
        %v235 = vld [vmem:[%s191 + $0x60] sm:$0xff]
        %v236 = vld [vmem:[%s191 + $0x68] sm:$0xff]
        %v237 = vld [vmem:[%s191 + $0x70] sm:$0xff]
        %v238 = vld [vmem:[%s191 + $0x78] sm:$0xff]
        %v239 = vld [vmem:[%s2] sm:$0xff]
        %v240 = vld [vmem:[%s2 + $0x8] sm:$0xff]
        %v241 = vld [vmem:[%s2 + $0x10] sm:$0xff]
        %v242 = vld [vmem:[%s2 + $0x18] sm:$0xff]
        %244 = vset.pattern.permute.xlu0 0
        %245 = vperm.xlu0 %244, %v239
        %v246 = vpop.permute.xlu0 %245
        %249 = vset.pattern.permute.xlu0 0
        %250 = vperm.xlu0 %249, %v240
        %v251 = vpop.permute.xlu0 %250
        %254 = vset.pattern.permute.xlu0 0
        %255 = vperm.xlu0 %254, %v241
        %v256 = vpop.permute.xlu0 %255
        %259 = vset.pattern.permute.xlu0 0
        %260 = vperm.xlu0 %259, %v242
        %v261 = vpop.permute.xlu0 %260
        %v267 = vunpack.c.l.b16 %v219
        %v268 = vunpack.c.l.b16 %v220
        %v269 = vunpack.c.l.b16 %v221
        %v270 = vunpack.c.l.b16 %v222
        %v271 = vpack.c.b16 %v268, %v267
        %v272 = vpack.c.b16 %v270, %v269
        %v291 = vunpack.c.l.b16 %v223
        %v292 = vunpack.c.h.b16 %v223
        %v293 = vunpack.c.l.b16 %v224
        %v294 = vunpack.c.h.b16 %v224
        %v295 = vunpack.c.l.b16 %v225
        %v296 = vunpack.c.h.b16 %v225
        %v297 = vunpack.c.l.b16 %v226
        %v298 = vunpack.c.h.b16 %v226
        %v299 = vunpack.c.l.b16 %v227
        %v300 = vunpack.c.h.b16 %v227
        %v301 = vunpack.c.l.b16 %v228
        %v302 = vunpack.c.h.b16 %v228
        %v303 = vunpack.c.l.b16 %v229
        %v304 = vunpack.c.h.b16 %v229
        %v305 = vunpack.c.l.b16 %v230
        %v306 = vunpack.c.h.b16 %v230
        %v307 = vunpack.c.l.b16 %v231
        %v308 = vunpack.c.h.b16 %v231
        %v309 = vunpack.c.l.b16 %v232
        %v310 = vunpack.c.h.b16 %v232
        %v311 = vunpack.c.l.b16 %v233
        %v312 = vunpack.c.h.b16 %v233
        %v313 = vunpack.c.l.b16 %v234
        %v314 = vunpack.c.h.b16 %v234
        %v315 = vunpack.c.l.b16 %v235
        %v316 = vunpack.c.h.b16 %v235
        %v317 = vunpack.c.l.b16 %v236
        %v318 = vunpack.c.h.b16 %v236
        %v319 = vunpack.c.l.b16 %v237
        %v320 = vunpack.c.h.b16 %v237
        %v321 = vunpack.c.l.b16 %v238
        %v322 = vunpack.c.h.b16 %v238
        %v323 = vpack.c.b16 %v293, %v291
        %v324 = vpack.c.b16 %v294, %v292
        %v325 = vpack.c.b16 %v297, %v295
        %v326 = vpack.c.b16 %v298, %v296
        %v327 = vpack.c.b16 %v301, %v299
        %v328 = vpack.c.b16 %v302, %v300
        %v329 = vpack.c.b16 %v305, %v303
        %v330 = vpack.c.b16 %v306, %v304
        %v331 = vpack.c.b16 %v309, %v307
        %v332 = vpack.c.b16 %v310, %v308
        %v333 = vpack.c.b16 %v313, %v311
        %v334 = vpack.c.b16 %v314, %v312
        %v335 = vpack.c.b16 %v317, %v315
        %v336 = vpack.c.b16 %v318, %v316
        %v337 = vpack.c.b16 %v321, %v319
        %v338 = vpack.c.b16 %v322, %v320
        %355 = vmatprep.subr.bf16.mxu0 %v338
        %356 = vmatpush1.bf16.msra.mxu0 %v337
        %357 = vmatprep.subr.bf16.mxu0 %v336
        %358 = vmatpush1.bf16.msra.mxu0 %v335
        %359 = vmatprep.subr.bf16.mxu0 %v334
        %360 = vmatpush1.bf16.msra.mxu0 %v333
        %361 = vmatprep.subr.bf16.mxu0 %v332
        %362 = vmatpush1.bf16.msra.mxu0 %v331
        %363 = vmatprep.subr.bf16.mxu0 %v330
        %364 = vmatpush1.bf16.msra.mxu0 %v329
        %365 = vmatprep.subr.bf16.mxu0 %v328
        %366 = vmatpush1.bf16.msra.mxu0 %v327
        %367 = vmatprep.subr.bf16.mxu0 %v326
        %368 = vmatpush1.bf16.msra.mxu0 %v325
        %369 = vmatprep.subr.bf16.mxu0 %v324
        %370 = vmatpush1.bf16.msra.mxu0 %v323
        %371 = vmatprep.subr.bf16.mxu0 0
        %372 = vmatpush2.bf16.msra.mxu0 0
        %373 = vmatprep.subr.bf16.mxu0 0
        %374 = vmatpush2.bf16.msra.mxu0 0
        %375 = vmatprep.subr.bf16.mxu0 0
        %376 = vmatpush2.bf16.msra.mxu0 0
        %377 = vmatprep.subr.bf16.mxu0 0
        %378 = vmatpush2.bf16.msra.mxu0 0
        %379 = vmatprep.subr.bf16.mxu0 0
        %380 = vmatpush2.bf16.msra.mxu0 0
        %381 = vmatprep.subr.bf16.mxu0 0
        %382 = vmatpush2.bf16.msra.mxu0 0
        %383 = vmatprep.subr.bf16.mxu0 0
        %384 = vmatpush2.bf16.msra.mxu0 0
        %385 = vmatprep.subr.bf16.mxu0 0
        %386 = vmatpush2.bf16.msra.mxu0 0
        %387 = vmatprep.mubr.bf16.mxu0 0
        %388 = vmatmul.mubr.bf16.gmra.mxu0 %v271
        %v389 = vpop.f32.mrf.mxu0
        %v390 = vadd.f32 %v246, %v389
        %v391 = vpop.f32.mrf.mxu0
        %v392 = vadd.f32 %v246, %v391
        %v393 = vpop.f32.mrf.mxu0
        %v394 = vadd.f32 %v251, %v393
        %v395 = vpop.f32.mrf.mxu0
        %v396 = vadd.f32 %v251, %v395
        %397 = vmatprep.mubr.bf16.mxu0 0
        %398 = vmatmul.mubr.bf16.gmra.mxu0 %v272
        %v399 = vpop.f32.mrf.mxu0
        %v400 = vadd.f32 %v256, %v399
        %v401 = vpop.f32.mrf.mxu0
        %v402 = vadd.f32 %v256, %v401
        %v403 = vpop.f32.mrf.mxu0
        %v404 = vadd.f32 %v261, %v403
        %v405 = vpop.f32.mrf.mxu0
        %v406 = vadd.f32 %v261, %v405
        %407 = vdwg.mxu0
        %vm408 = vcmp.ge.f32.partialorder %v390, 0.0
        %vm409 = vcmp.ge.f32.partialorder %v392, 0.0
        %vm410 = vcmp.ge.f32.partialorder %v394, 0.0
        %vm411 = vcmp.ge.f32.partialorder %v396, 0.0
        %vm412 = vcmp.ge.f32.partialorder %v400, 0.0
        %vm413 = vcmp.ge.f32.partialorder %v402, 0.0
        %vm414 = vcmp.ge.f32.partialorder %v404, 0.0
        %vm415 = vcmp.ge.f32.partialorder %v406, 0.0
        %v416 = vmul.f32 %v390, 0.01
        %v417 = vmul.f32 %v392, 0.01
        %v418 = vmul.f32 %v394, 0.01
        %v419 = vmul.f32 %v396, 0.01
        %v420 = vmul.f32 %v400, 0.01
        %v421 = vmul.f32 %v402, 0.01
        %v422 = vmul.f32 %v404, 0.01
        %v423 = vmul.f32 %v406, 0.01
        %v424 = vsel %vm408, %v390, %v416
        %v425 = vsel %vm409, %v392, %v417
        %v426 = vsel %vm410, %v394, %v418
        %v427 = vsel %vm411, %v396, %v419
        %v428 = vsel %vm412, %v400, %v420
        %v429 = vsel %vm413, %v402, %v421
        %v430 = vsel %vm414, %v404, %v422
        %v431 = vsel %vm415, %v406, %v423
        %v432 = vld [vmem:[%s3] sm:$0xff]
        %vm433 = vcmask 261120
        %v435 = vsel %vm433, %v432, 0
        %437 = vmatprep.subr.mxu0 0.0
        %438 = vmatpush1.msra.mxu0 0.0
        %439 = vmatprep.subr.mxu0 0.0
        %440 = vmatpush1.msra.mxu0 0.0
        %441 = vmatprep.subr.mxu0 0.0
        %442 = vmatpush1.msra.mxu0 0.0
        %443 = vmatprep.subr.mxu0 0.0
        %444 = vmatpush1.msra.mxu0 0.0
        %445 = vmatprep.subr.mxu0 0.0
        %446 = vmatpush1.msra.mxu0 0.0
        %447 = vmatprep.subr.mxu0 0.0
        %448 = vmatpush1.msra.mxu0 0.0
        %449 = vmatprep.subr.mxu0 0.0
        %450 = vmatpush1.msra.mxu0 0.0
        %451 = vmatprep.subr.mxu0 0.0
        %452 = vmatpush1.msra.mxu0 0.0
        %453 = vmatprep.subr.mxu0 0.0
        %454 = vmatpush1.msra.mxu0 0.0
        %455 = vmatprep.subr.mxu0 0.0
        %456 = vmatpush1.msra.mxu0 0.0
        %457 = vmatprep.subr.mxu0 0.0
        %458 = vmatpush1.msra.mxu0 0.0
        %459 = vmatprep.subr.mxu0 0.0
        %460 = vmatpush1.msra.mxu0 0.0
        %461 = vmatprep.subr.mxu0 %v431
        %462 = vmatpush1.msra.mxu0 %v430
        %463 = vmatprep.subr.mxu0 %v429
        %464 = vmatpush1.msra.mxu0 %v428
        %465 = vmatprep.subr.mxu0 %v427
        %466 = vmatpush1.msra.mxu0 %v426
        %467 = vmatprep.subr.mxu0 %v425
        %468 = vmatpush1.msra.mxu0 %v424
        %469 = vmatprep.subr.mxu0 0.0
        %470 = vmatpush2.msra.mxu0 0.0
        %471 = vmatprep.subr.mxu0 0.0
        %472 = vmatpush2.msra.mxu0 0.0
        %473 = vmatprep.subr.mxu0 0.0
        %474 = vmatpush2.msra.mxu0 0.0
        %475 = vmatprep.subr.mxu0 0.0
        %476 = vmatpush2.msra.mxu0 0.0
        %477 = vmatprep.subr.mxu0 0.0
        %478 = vmatpush2.msra.mxu0 0.0
        %479 = vmatprep.subr.mxu0 0.0
        %480 = vmatpush2.msra.mxu0 0.0
        %481 = vmatprep.subr.mxu0 0.0
        %482 = vmatpush2.msra.mxu0 0.0
        %483 = vmatprep.subr.mxu0 0.0
        %484 = vmatpush2.msra.mxu0 0.0
        %485 = vmatprep.subr.mxu0 0.0
        %486 = vmatpush2.msra.mxu0 0.0
        %487 = vmatprep.subr.mxu0 0.0
        %488 = vmatpush2.msra.mxu0 0.0
        %489 = vmatprep.subr.mxu0 0.0
        %490 = vmatpush2.msra.mxu0 0.0
        %491 = vmatprep.subr.mxu0 0.0
        %492 = vmatpush2.msra.mxu0 0.0
        %493 = vmatprep.subr.mxu0 0.0
        %494 = vmatpush2.msra.mxu0 0.0
        %495 = vmatprep.subr.mxu0 0.0
        %496 = vmatpush2.msra.mxu0 0.0
        %497 = vmatprep.subr.mxu0 0.0
        %498 = vmatpush2.msra.mxu0 0.0
        %499 = vmatprep.subr.mxu0 0.0
        %500 = vmatpush2.msra.mxu0 0.0
        %501 = vmatprep.mubr.f32.mxu0 0.0
        %502 = vmatmul.mubr.f32.gmra.mxu0 %v435
        %v503 = vpop.f32.mrf.mxu0
        %v504 = vadd.f32 0.0, %v503
        %v505 = vpop.f32.mrf.mxu0
        %v506 = vadd.f32 0.0, %v505
        %507 = vdwg.mxu0
        %508 = vst [vmem:[%s215] sm:$0xff] %v504
        %509 = vst [vmem:[%s215 + $0x8] sm:$0xff] %v506
        %s510 = sand.u32 %s118, 1
        %s511 = scalar_lea.sflag [#allocation4], %s510
        %s512 = sand.u32 %s118, 1
        %s513 = smul.addr %s512, 16
        %s514 = scalar_lea.vmem [#allocation5], %s513
        // Predicated region
        $region41: #{tpu_custom_call.1} parent=35 // pred_check
          %p515 = pneg %p128
        $region42: #{tpu_custom_call.1} parent=35 // pred_check_branch
          %517 = sbr.rel (%p515) target = $region44
        $region43: #{tpu_custom_call.1} parent=35 // pred_region
          %s518 = smul.u32 2, %s21
          %s520 = ssub.s32 256, 256
          %521 = vsyncadd %s511, %s520
          %s522 = smul.addr %s518, 128
          %s523 = scalar_lea.hbm %s4, %s522
          %s525 = sshll.u32 %s514, 4
          %s526 = int_to_ptr.vmem [resolvable:$true] %s525
          %528 = dma.vmem_to_hbm [thread:$0]  %s526, 256, %s523, %s511
        $region44: #{tpu_custom_call.1} parent=35 // pred_fallthru
          _
      $region36: #{tpu_custom_call.1} parent=5 // pred_fallthru
        _
      %p529 = scmp.le.s32.totalorder 2, %s16
      // Predicated region
      $region45: #{tpu_custom_call.1} parent=5 // pred_check
        %p530 = pneg %p529
      $region46: #{tpu_custom_call.1} parent=5 // pred_check_branch
        %532 = sbr.rel (%p530) target = $region48
      $region47: #{tpu_custom_call.1} parent=5 // pred_region
        %s533 = ssub.s32 %s16, 2
        // Predicated region
        $region49: #{tpu_custom_call.1} parent=47 // pred_check
          %p534 = pneg %p134
        $region50: #{tpu_custom_call.1} parent=47 // pred_check_branch
          %536 = sbr.rel (%p534) target = $region52
        $region51: #{tpu_custom_call.1} parent=47 // pred_region
          %s537 = sand.u32 %s119, 1
          %s538 = scalar_lea.sflag [#allocation4], %s537
          %s539 = sand.u32 %s119, 1
          %s540 = smul.addr %s539, 16
          %s541 = scalar_lea.vmem [#allocation5], %s540
          %542 = dma.done %s538, 256
        $region52: #{tpu_custom_call.1} parent=47 // pred_fallthru
          _
      $region48: #{tpu_custom_call.1} parent=5 // pred_fallthru
        _
    $region6: #{tpu_custom_call.1} parent=1 // loop_footer
      %s20 = sadd.s32 1, %s16
    $region7: #{tpu_custom_call.1} parent=1 // loop_footer_branch
      %15 = sbr.rel target = $region3
    $region8: #{tpu_custom_call.1} parent=1 // loop_exit
      _
    %543 = vsyncpa [#allocation3], 1
    %s544 = scalar_lea.sflag [#allocation3], 1
    %545 = vsyncpa %s544, 1
    %546 = vsyncpa [#allocation4], 1
    %s547 = scalar_lea.sflag [#allocation4], 1
    %548 = vsyncpa %s547, 1

</llo_original>
